<compile_context>
chip_gen: v7x
topology: tpu7x:2x2x1
jax: 0.10.0
libtpu: 0.0.40
codegen_flags: <defaults>
</compile_context>

<pallas_src>
import functools

import jax
import jax.numpy as jnp
import numpy as np
from jax.experimental import pallas as pl
from jax.experimental.pallas import tpu as pltpu

_MIB = 1024 * 1024


def _cdiv(a, b):
    return (a + b - 1) // b


def _vmem_capacity_bytes(default=128 * _MIB):
    """Best-effort, generation-aware query of per-core VMEM capacity."""
    try:
        info = pltpu.get_tpu_info()
        cap = getattr(info, "vmem_capacity_bytes", None)
        if cap:
            return int(cap)
    except Exception:
        pass
    return default


def _choose_tiling(N, C, hw, itemsize, vmem_cap, target_block_bytes=None):
    """Pick (tile_n, tile_hw) targeting ~1-2 MiB per input block per step."""
    if target_block_bytes is None:
        # Bigger tiles on 128 MiB parts (v5e/v6e); stay conservative on v7x.
        target_block_bytes = 2 * _MIB if vmem_cap >= 96 * _MIB else 1 * _MIB
    target_block_bytes = int(target_block_bytes)

    # Lanes per batch row within the byte budget; last-dim blocks must be a
    # multiple of 128 unless they cover the full spatial extent.
    lanes_budget = max(128, target_block_bytes // (C * itemsize))
    if hw <= lanes_budget:
        tile_hw = hw                              # full extent: no lane mask
    else:
        tile_hw = (lanes_budget // 128) * 128     # multiple of 128 lanes

    # If C alone is small, fill the budget with a batch tile.
    tile_n = max(1, target_block_bytes // (C * tile_hw * itemsize))
    tile_n = min(tile_n, N)
    # TODO(synk): channel tiling for extremely large C (where a single
    # (1, C, 128) block would not fit VMEM) is not implemented.
    return tile_n, tile_hw


def _cosine_loss_kernel(x_ref, y_ref, out_ref, acc_ref, *,
                        n_total, hw, tile_n, tile_hw, eps, mask_n, mask_hw):
    n = pl.program_id(0)          # batch-tile index (parallel axis)
    r = pl.program_id(1)          # spatial-tile index (reduction axis)
    last_r = pl.num_programs(1) - 1

    # Fresh accumulator per batch tile (output block only depends on n, so it
    # stays resident across the whole r loop and is written back once).
    @pl.when(r == 0)
    def _():
        acc_ref[...] = jnp.zeros_like(acc_ref)

    # Blocks are (tile_n, C, tile_hw): channels on sublanes, pixels on lanes.
    # HBM traffic stays in the native input dtype; upcast happens in-kernel.
    x = x_ref[...].astype(jnp.float32)
    y = y_ref[...].astype(jnp.float32)

    dot = jnp.sum(x * y, axis=1)                       # (tile_n, tile_hw)
    sxx = jnp.sum(x * x, axis=1)
    syy = jnp.sum(y * y, axis=1)
    # max(sqrt(s), eps) == sqrt(max(s, eps^2)); rsqrt lands on the EUP slot.
    eps2 = eps * eps
    inv = jax.lax.rsqrt(jnp.maximum(sxx, eps2)) * jax.lax.rsqrt(
        jnp.maximum(syy, eps2))
    per = 1.0 - dot * inv                              # per-pixel 1 - cos

    if mask_n or mask_hw:
        # Padding rows/lanes exist only on the final tile of a ragged axis;
        # interior tiles accumulate without any masking work.
        conds = []
        if mask_hw:
            conds.append(r == last_r)
        if mask_n:
            conds.append(n == pl.num_programs(0) - 1)
        edge = conds[0]
        for c in conds[1:]:
            edge = jnp.logical_or(edge, c)

        @pl.when(edge)
        def _():
            valid = None
            if mask_n:
                row = jax.lax.broadcasted_iota(jnp.int32, per.shape, 0)
                v = (n * tile_n + row) < n_total
                valid = v
            if mask_hw:
                lane = jax.lax.broadcasted_iota(jnp.int32, per.shape, 1)
                v = (r * tile_hw + lane) < hw
                valid = v if valid is None else jnp.logical_and(valid, v)
            acc_ref[...] += jnp.where(valid, per, 0.0)

        @pl.when(jnp.logical_not(edge))
        def _():
            acc_ref[...] += per
    else:
        acc_ref[...] += per

    # One cross-lane reduction + tiny store per batch tile.
    @pl.when(r == last_r)
    def _():
        out_ref[...] = jnp.sum(acc_ref[...], keepdims=True)


def cosine_loss(x, y, *, reduction="mean", eps=1e-8, target_block_bytes=None):
    """x, y: (N, C, *spatial) arrays; cosine similarity taken over dim=1."""
    assert x.shape == y.shape, "x and y must have the same shape"
    N, C = int(x.shape[0]), int(x.shape[1])
    hw = int(np.prod(x.shape[2:])) if x.ndim > 2 else 1

    # Free reshape from native NCHW layout: no transpose, no pad, no copy.
    x3 = x.reshape(N, C, hw)
    y3 = y.reshape(N, C, hw)
    itemsize = int(np.dtype(x3.dtype).itemsize)

    vmem_cap = _vmem_capacity_bytes()
    tile_n, tile_hw = _choose_tiling(N, C, hw, itemsize, vmem_cap,
                                     target_block_bytes)
    num_batch_tiles = _cdiv(N, tile_n)
    num_spatial_tiles = _cdiv(hw, tile_hw)
    mask_n = (N % tile_n) != 0
    mask_hw = (hw % tile_hw) != 0

    # Generation-aware VMEM request: 2 inputs x 2 pipeline buffers + the f32
    # accumulator + margin for the in-kernel f32 working set, clamped below
    # physical capacity (64 MiB v7x, 128 MiB v5e/v6e).
    block_bytes = tile_n * C * tile_hw * itemsize
    f32_block = tile_n * C * tile_hw * 4
    acc_bytes = tile_n * tile_hw * 4
    vmem_need = 4 * block_bytes + acc_bytes + 6 * f32_block + 4 * _MIB
    hard_cap = max(vmem_cap - 8 * _MIB, 32 * _MIB)
    vmem_limit = int(min(max(vmem_need, 32 * _MIB), hard_cap))

    kernel = functools.partial(
        _cosine_loss_kernel, n_total=N, hw=hw, tile_n=tile_n, tile_hw=tile_hw,
        eps=float(eps), mask_n=mask_n, mask_hw=mask_hw)

    partials = pl.pallas_call(
        kernel,
        out_shape=jax.ShapeDtypeStruct((num_batch_tiles, 1), jnp.float32),
        grid_spec=pltpu.PrefetchScalarGridSpec(
            num_scalar_prefetch=0,
            grid=(num_batch_tiles, num_spatial_tiles),
            in_specs=[pl.BlockSpec((tile_n, C, tile_hw), lambda n, r: (n, 0, r)),
                      pl.BlockSpec((tile_n, C, tile_hw), lambda n, r: (n, 0, r))],
            out_specs=pl.BlockSpec((1, 1), lambda n, r: (n, 0)),
            scratch_shapes=[pltpu.VMEM((tile_n, tile_hw), jnp.float32)],
        ),
        compiler_params=pltpu.CompilerParams(
            # Batch-tile axis is parallel (megacore / v7x dual-TC); the
            # spatial axis carries the per-batch-tile accumulator.
            dimension_semantics=("parallel", "arbitrary"),
            vmem_limit_bytes=vmem_limit),
    )(x3, y3)

    loss_sum = jnp.sum(partials)
    total = N * hw
    if reduction == "mean":
        return -(loss_sum / jnp.float32(total))
    elif reduction == "sum":
        return -loss_sum
    else:
        # TODO(synk): reduction='none' (per-element output) is not fused here.
        raise NotImplementedError(f"reduction={reduction!r} not supported")


def _reference(x, y, reduction="mean", eps=1e-8):
    """Plain-JAX reference mirroring the PyTorch module."""
    xf = x.astype(jnp.float32)
    yf = y.astype(jnp.float32)
    dot = jnp.sum(xf * yf, axis=1)
    nx = jnp.maximum(jnp.sqrt(jnp.sum(xf * xf, axis=1)), eps)
    ny = jnp.maximum(jnp.sqrt(jnp.sum(yf * yf, axis=1)), eps)
    cos = dot / (nx * ny)
    loss = 1.0 - cos
    if reduction == "mean":
        loss = jnp.mean(loss)
    elif reduction == "sum":
        loss = jnp.sum(loss)
    return -loss


if __name__ == "__main__":
    key = jax.random.PRNGKey(0)
    k1, k2, k3, k4 = jax.random.split(key, 4)

    # Primary small example matching the module's expected NCHW inputs.
    N, C, H, W = 2, 4, 16, 16
    x = jax.random.normal(k1, (N, C, H, W), dtype=jnp.float32)
    y = jax.random.normal(k2, (N, C, H, W), dtype=jnp.float32)

    loss = jax.block_until_ready(cosine_loss(x, y, reduction="mean"))
    ref = _reference(x, y, reduction="mean")
    np.testing.assert_allclose(np.asarray(loss), np.asarray(ref),
                               rtol=1e-5, atol=1e-5)

    loss_s = jax.block_until_ready(cosine_loss(x, y, reduction="sum"))
    ref_s = _reference(x, y, reduction="sum")
    np.testing.assert_allclose(np.asarray(loss_s), np.asarray(ref_s),
                               rtol=1e-5, atol=1e-5)

    # Exercise the ragged spatial-tile path (hw % tile_hw != 0, no host pad).
    x2 = jax.random.normal(k3, (2, 3, 17, 19), dtype=jnp.float32)
    y2 = jax.random.normal(k4, (2, 3, 17, 19), dtype=jnp.float32)
    loss2 = jax.block_until_ready(
        cosine_loss(x2, y2, reduction="mean", target_block_bytes=3 * 128 * 4))
    ref2 = _reference(x2, y2, reduction="mean")
    np.testing.assert_allclose(np.asarray(loss2), np.asarray(ref2),
                               rtol=1e-5, atol=1e-5)

    # Exercise the ragged batch-tile path (N % tile_n != 0).
    x3_ = jax.random.normal(k1, (3, 4, 16, 16), dtype=jnp.float32)
    y3_ = jax.random.normal(k2, (3, 4, 16, 16), dtype=jnp.float32)
    loss3 = jax.block_until_ready(
        cosine_loss(x3_, y3_, reduction="mean",
                    target_block_bytes=2 * 4 * 256 * 4))
    ref3 = _reference(x3_, y3_, reduction="mean")
    np.testing.assert_allclose(np.asarray(loss3), np.asarray(ref3),
                               rtol=1e-5, atol=1e-5)

    print("KERNEL_OK")
</pallas_src>

<mosaic_0001>
module attributes {stable_mosaic.version = 11 : i64} {
  func.func @_cosine_loss_kernel(%arg0: i32, %arg1: i32, %arg2: memref<2x4x256xf32, #tpu.memory_space<vmem>>, %arg3: memref<2x4x256xf32, #tpu.memory_space<vmem>>, %arg4: memref<1x1xf32, #tpu.memory_space<vmem>>, %arg5: memref<2x256xf32, #tpu.memory_space<vmem>>) attributes {dimension_semantics = [#tpu.dimension_semantics<parallel>, #tpu.dimension_semantics<arbitrary>], iteration_bounds = array<i64: 1, 1>, scalar_prefetch = 0 : i64, scratch_operands = 1 : i64, tpu.core_type = #tpu.core_type<tc>, window_params = [{transform_indices = @transform_0, window_bounds = array<i64: 2, 4, 256>}, {transform_indices = @transform_1, window_bounds = array<i64: 2, 4, 256>}, {transform_indices = @transform_2, window_bounds = array<i64: 1, 1>}]} {
    %c0_i32 = arith.constant 0 : i32
    %0 = arith.cmpi eq, %arg1, %c0_i32 : i32
    %1 = arith.extui %0 : i1 to i32
    %c0_i32_0 = arith.constant 0 : i32
    %2 = arith.cmpi ne, %1, %c0_i32_0 : i32
    scf.if %2 {
      %cst_17 = arith.constant 0.000000e+00 : f32
      %27 = vector.broadcast %cst_17 : f32 to vector<2x256xf32>
      %c0_18 = arith.constant 0 : index
      %c0_19 = arith.constant 0 : index
      %28 = vector.load %arg5[%c0_18, %c0_19] : memref<2x256xf32, #tpu.memory_space<vmem>>, vector<2x256xf32>
      tpu.vector_store %arg5[%c0_18, %c0_19], %27 {strides = array<i32>} : memref<2x256xf32, #tpu.memory_space<vmem>>, vector<2x256xf32>,
    } else {
    }
    %c0 = arith.constant 0 : index
    %c0_1 = arith.constant 0 : index
    %c0_2 = arith.constant 0 : index
    %3 = vector.load %arg2[%c0, %c0_1, %c0_2] : memref<2x4x256xf32, #tpu.memory_space<vmem>>, vector<2x4x256xf32>
    %c0_3 = arith.constant 0 : index
    %c0_4 = arith.constant 0 : index
    %c0_5 = arith.constant 0 : index
    %4 = vector.load %arg3[%c0_3, %c0_4, %c0_5] : memref<2x4x256xf32, #tpu.memory_space<vmem>>, vector<2x4x256xf32>
    %5 = arith.mulf %3, %4 : vector<2x4x256xf32>
    %cst = arith.constant dense<0.000000e+00> : vector<2x256xf32>
    %6 = vector.multi_reduction <add>, %5, %cst [1] : vector<2x4x256xf32> to vector<2x256xf32>
    %7 = arith.mulf %3, %3 : vector<2x4x256xf32>
    %cst_6 = arith.constant dense<0.000000e+00> : vector<2x256xf32>
    %8 = vector.multi_reduction <add>, %7, %cst_6 [1] : vector<2x4x256xf32> to vector<2x256xf32>
    %9 = arith.mulf %4, %4 : vector<2x4x256xf32>
    %cst_7 = arith.constant dense<0.000000e+00> : vector<2x256xf32>
    %10 = vector.multi_reduction <add>, %9, %cst_7 [1] : vector<2x4x256xf32> to vector<2x256xf32>
    %cst_8 = arith.constant 1.000000e-16 : f32
    %11 = vector.broadcast %cst_8 : f32 to vector<2x256xf32>
    %12 = arith.maximumf %8, %11 : vector<2x256xf32>
    %13 = math.rsqrt %12 : vector<2x256xf32>
    %cst_9 = arith.constant 1.000000e-16 : f32
    %14 = vector.broadcast %cst_9 : f32 to vector<2x256xf32>
    %15 = arith.maximumf %10, %14 : vector<2x256xf32>
    %16 = math.rsqrt %15 : vector<2x256xf32>
    %17 = arith.mulf %13, %16 : vector<2x256xf32>
    %18 = arith.mulf %6, %17 : vector<2x256xf32>
    %cst_10 = arith.constant 1.000000e+00 : f32
    %19 = vector.broadcast %cst_10 : f32 to vector<2x256xf32>
    %20 = arith.subf %19, %18 : vector<2x256xf32>
    %c0_11 = arith.constant 0 : index
    %c0_12 = arith.constant 0 : index
    %21 = vector.load %arg5[%c0_11, %c0_12] : memref<2x256xf32, #tpu.memory_space<vmem>>, vector<2x256xf32>
    %22 = arith.addf %21, %20 : vector<2x256xf32>
    %c0_13 = arith.constant 0 : index
    %c0_14 = arith.constant 0 : index
    %23 = vector.load %arg5[%c0_13, %c0_14] : memref<2x256xf32, #tpu.memory_space<vmem>>, vector<2x256xf32>
    tpu.vector_store %arg5[%c0_13, %c0_14], %22 {strides = array<i32>} : memref<2x256xf32, #tpu.memory_space<vmem>>, vector<2x256xf32>,
    %c0_i32_15 = arith.constant 0 : i32
    %24 = arith.cmpi eq, %arg1, %c0_i32_15 : i32
    %25 = arith.extui %24 : i1 to i32
    %c0_i32_16 = arith.constant 0 : i32
    %26 = arith.cmpi ne, %25, %c0_i32_16 : i32
    scf.if %26 {
      %c0_17 = arith.constant 0 : index
      %c0_18 = arith.constant 0 : index
      %27 = vector.load %arg5[%c0_17, %c0_18] : memref<2x256xf32, #tpu.memory_space<vmem>>, vector<2x256xf32>
      %28 = vector.shape_cast %27 : vector<2x256xf32> to vector<1x2x256xf32>
      %cst_19 = arith.constant dense<0.000000e+00> : vector<1xf32>
      %29 = vector.multi_reduction <add>, %28, %cst_19 [1, 2] : vector<1x2x256xf32> to vector<1xf32>
      %30 = vector.shape_cast %29 : vector<1xf32> to vector<1x1x1xf32>
      %31 = vector.extract %30[0, 0, 0] : f32 from vector<1x1x1xf32>
      %32 = vector.broadcast %31 : f32 to vector<1x1xf32>
      %c0_20 = arith.constant 0 : index
      %c0_21 = arith.constant 0 : index
      %33 = vector.load %arg4[%c0_20, %c0_21] : memref<1x1xf32, #tpu.memory_space<vmem>>, vector<1x1xf32>
      tpu.vector_store %arg4[%c0_20, %c0_21], %32 {strides = array<i32>} : memref<1x1xf32, #tpu.memory_space<vmem>>, vector<1x1xf32>,
    } else {
    }
    return
  }
  func.func @transform_0(%arg0: i32, %arg1: i32) -> (i32, i32, i32) {
    %c0_i32 = arith.constant 0 : i32
    %c0_i32_0 = arith.constant 0 : i32
    return %arg0, %c0_i32, %arg1 : i32, i32, i32
  }
  func.func @transform_1(%arg0: i32, %arg1: i32) -> (i32, i32, i32) {
    %c0_i32 = arith.constant 0 : i32
    %c0_i32_0 = arith.constant 0 : i32
    return %arg0, %c0_i32, %arg1 : i32, i32, i32
  }
  func.func @transform_2(%arg0: i32, %arg1: i32) -> (i32, i32) {
    %c0_i32 = arith.constant 0 : i32
    %c0_i32_0 = arith.constant 0 : i32
    return %arg0, %c0_i32 : i32, i32
  }
}

</mosaic_0001>

<llo_original>
// kernel: tpu_custom_call.1
$region0: #{tpu_custom_call.1}
  #allocation0 [shape = 'u32[]', space=smem, size = 0x4, offset = 0x4, fixed_abs, tag = 'smem constant byte address 0x4 - core index']
  #allocation1 [shape = 'u32[144,128]{1,0:T(1,128)}', space=vmem, size = 0x12000, scoped, tag = 'internal scratch']
  #allocation2 [shape = 'f32[2,256]{1,0:T(2,128)}', space=vmem, size = 0x800, scoped, tag = 'scratch operand']
  %s0 = inlined_call_operand.hbm [shape: f32[2,4,256], index: 0, kind: input, shape index: {}]
  %s1 = inlined_call_operand.hbm [shape: f32[2,4,256], index: 1, kind: input, shape index: {}]
  %s2 = inlined_call_operand.hbm [shape: f32[1,1], index: 2, kind: output, shape index: {}]
  %s3 = sld [smem:[#allocation0]]
  $region34: #{tpu_custom_call.1} parent=0
    _
  %s5 = ssub.s32 1, %s3
  %s6 = scalar_select 0, %s5, %s3
  $region1: #{tpu_custom_call.1} parent=0
    #allocation3 [shape = 'u8[8192]{0}', space=vmem, size = 0x2000, scoped, tag = 'input window, operand 0, single buffered']
    #allocation4 [shape = 's32[1]{0}', space=sflag, size = 0x4, scoped, tag = 'scoped memory for tpu_custom_call.1']
    #allocation5 [shape = 's32[1]{0}', space=sflag, size = 0x4, scoped, tag = 'scoped memory for tpu_custom_call.1']
    #allocation6 [shape = 'u8[8192]{0}', space=vmem, size = 0x2000, scoped, tag = 'input window, operand 1, single buffered']
    #allocation7 [shape = 's32[1]{0}', space=sflag, size = 0x4, scoped, tag = 'scoped memory for tpu_custom_call.1']
    #allocation8 [shape = 'u8[512]{0}', space=vmem, size = 0x400, scoped, tag = 'output window, operand 0, single buffered']
    %7 = vsyncpa [#allocation4], 0
    %8 = vsyncpa [#allocation7], 0
    %9 = vsyncpa [#allocation5], 0
    // Predicated region
    $region2: #{tpu_custom_call.1} parent=1 // pred_check
      _
    $region3: #{tpu_custom_call.1} parent=1 // pred_check_branch
      %11 = sbr.rel (0) target = $region5
    $region4: #{tpu_custom_call.1} parent=1 // pred_region
      %s13 = ssub.s32 256, 256
      %14 = vsyncadd [#allocation4], %s13
      %s15 = sshll.u32 [#allocation3], 4
      %s16 = int_to_ptr.vmem [resolvable:$true] %s15
      %21 = dma.hbm_to_vmem [thread:$0]  %s0, 256, %s16, [#allocation4], 128, 128, 8
    $region5: #{tpu_custom_call.1} parent=1 // pred_fallthru
      _
    // Predicated region
    $region6: #{tpu_custom_call.1} parent=1 // pred_check
      _
    $region7: #{tpu_custom_call.1} parent=1 // pred_check_branch
      %23 = sbr.rel (0) target = $region9
    $region8: #{tpu_custom_call.1} parent=1 // pred_region
      %s25 = ssub.s32 256, 256
      %26 = vsyncadd [#allocation7], %s25
      %s27 = sshll.u32 [#allocation6], 4
      %s28 = int_to_ptr.vmem [resolvable:$true] %s27
      %33 = dma.hbm_to_vmem [thread:$0]  %s1, 256, %s28, [#allocation7], 128, 128, 8
    $region9: #{tpu_custom_call.1} parent=1 // pred_fallthru
      _
    // Predicated region
    $region10: #{tpu_custom_call.1} parent=1 // pred_check
      _
    $region11: #{tpu_custom_call.1} parent=1 // pred_check_branch
      %35 = sbr.rel (0) target = $region13
    $region12: #{tpu_custom_call.1} parent=1 // pred_region
      %36 = dma.done [#allocation4], 256
    $region13: #{tpu_custom_call.1} parent=1 // pred_fallthru
      _
    // Predicated region
    $region14: #{tpu_custom_call.1} parent=1 // pred_check
      _
    $region15: #{tpu_custom_call.1} parent=1 // pred_check_branch
      %38 = sbr.rel (0) target = $region17
    $region16: #{tpu_custom_call.1} parent=1 // pred_region
      %39 = dma.done [#allocation7], 256
    $region17: #{tpu_custom_call.1} parent=1 // pred_fallthru
      _
    %p40 = scmp.eq.s32.totalorder 0, 0
    // Predicated region
    $region18: #{tpu_custom_call.1} parent=1 // pred_check
      %p41 = pneg %p40
    $region19: #{tpu_custom_call.1} parent=1 // pred_check_branch
      %43 = sbr.rel (%p41) target = $region21
    $region20: #{tpu_custom_call.1} parent=1 // pred_region
      %44 = vst [vmem:[#allocation2] sm:$0xf] 0.0
    $region21: #{tpu_custom_call.1} parent=1 // pred_fallthru
      _
    %v45 = vld [vmem:[#allocation3] sm:$0xff]
    %v46 = vld [vmem:[#allocation3 + $0x8] sm:$0xff]
    %v47 = vld [vmem:[#allocation6] sm:$0xff]
    %v48 = vld [vmem:[#allocation6 + $0x8] sm:$0xff]
    %v49 = vmul.f32 %v45, %v47
    %v50 = vmul.f32 %v46, %v48
    %v53 = vcombine.high %v49, %v49
    %v54 = vcombine.high %v50, %v50
    %vm57 = vcmask 1043456
    %v58 = vsel %vm57, %v49, 0.0
    %v59 = vrot.slane %v58, 4
    %v60 = vadd.f32 %v58, %v59
    %v61 = vrot.slane %v60, 2
    %v62 = vadd.f32 %v60, %v61
    %v63 = vrot.slane %v62, 1
    %v64 = vadd.f32 %v62, %v63
    %v65 = vsel %vm57, %v53, 0.0
    %v66 = vrot.slane %v65, 4
    %v67 = vadd.f32 %v65, %v66
    %v68 = vrot.slane %v67, 2
    %v69 = vadd.f32 %v67, %v68
    %v70 = vrot.slane %v69, 1
    %v71 = vadd.f32 %v69, %v70
    %v72 = vsel %vm57, %v50, 0.0
    %v73 = vrot.slane %v72, 4
    %v74 = vadd.f32 %v72, %v73
    %v75 = vrot.slane %v74, 2
    %v76 = vadd.f32 %v74, %v75
    %v77 = vrot.slane %v76, 1
    %v78 = vadd.f32 %v76, %v77
    %v79 = vsel %vm57, %v54, 0.0
    %v80 = vrot.slane %v79, 4
    %v81 = vadd.f32 %v79, %v80
    %v82 = vrot.slane %v81, 2
    %v83 = vadd.f32 %v81, %v82
    %v84 = vrot.slane %v83, 1
    %v85 = vadd.f32 %v83, %v84
    %v86 = vmul.f32 %v45, %v45
    %v87 = vmul.f32 %v46, %v46
    %v90 = vcombine.high %v86, %v86
    %v91 = vcombine.high %v87, %v87
    %v94 = vsel %vm57, %v86, 0.0
    %v95 = vrot.slane %v94, 4
    %v96 = vadd.f32 %v94, %v95
    %v97 = vrot.slane %v96, 2
    %v98 = vadd.f32 %v96, %v97
    %v99 = vrot.slane %v98, 1
    %v100 = vadd.f32 %v98, %v99
    %v101 = vsel %vm57, %v90, 0.0
    %v102 = vrot.slane %v101, 4
    %v103 = vadd.f32 %v101, %v102
    %v104 = vrot.slane %v103, 2
    %v105 = vadd.f32 %v103, %v104
    %v106 = vrot.slane %v105, 1
    %v107 = vadd.f32 %v105, %v106
    %v108 = vsel %vm57, %v87, 0.0
    %v109 = vrot.slane %v108, 4
    %v110 = vadd.f32 %v108, %v109
    %v111 = vrot.slane %v110, 2
    %v112 = vadd.f32 %v110, %v111
    %v113 = vrot.slane %v112, 1
    %v114 = vadd.f32 %v112, %v113
    %v115 = vsel %vm57, %v91, 0.0
    %v116 = vrot.slane %v115, 4
    %v117 = vadd.f32 %v115, %v116
    %v118 = vrot.slane %v117, 2
    %v119 = vadd.f32 %v117, %v118
    %v120 = vrot.slane %v119, 1
    %v121 = vadd.f32 %v119, %v120
    %v122 = vmul.f32 %v47, %v47
    %v123 = vmul.f32 %v48, %v48
    %v126 = vcombine.high %v122, %v122
    %v127 = vcombine.high %v123, %v123
    %v130 = vsel %vm57, %v122, 0.0
    %v131 = vrot.slane %v130, 4
    %v132 = vadd.f32 %v130, %v131
    %v133 = vrot.slane %v132, 2
    %v134 = vadd.f32 %v132, %v133
    %v135 = vrot.slane %v134, 1
    %v136 = vadd.f32 %v134, %v135
    %v137 = vsel %vm57, %v126, 0.0
    %v138 = vrot.slane %v137, 4
    %v139 = vadd.f32 %v137, %v138
    %v140 = vrot.slane %v139, 2
    %v141 = vadd.f32 %v139, %v140
    %v142 = vrot.slane %v141, 1
    %v143 = vadd.f32 %v141, %v142
    %v144 = vsel %vm57, %v123, 0.0
    %v145 = vrot.slane %v144, 4
    %v146 = vadd.f32 %v144, %v145
    %v147 = vrot.slane %v146, 2
    %v148 = vadd.f32 %v146, %v147
    %v149 = vrot.slane %v148, 1
    %v150 = vadd.f32 %v148, %v149
    %v151 = vsel %vm57, %v127, 0.0
    %v152 = vrot.slane %v151, 4
    %v153 = vadd.f32 %v151, %v152
    %v154 = vrot.slane %v153, 2
    %v155 = vadd.f32 %v153, %v154
    %v156 = vrot.slane %v155, 1
    %v157 = vadd.f32 %v155, %v156
    %v158 = vmax.f32 %v100, 1e-16
    %v159 = vmax.f32 %v107, 1e-16
    %v160 = vmax.f32 %v114, 1e-16
    %v161 = vmax.f32 %v121, 1e-16
    %v162 = vrsqrt.pop %v158
    %v163 = vrsqrt.pop %v159
    %v164 = vrsqrt.pop %v160
    %v165 = vrsqrt.pop %v161
    %v166 = vmax.f32 %v136, 1e-16
    %v167 = vmax.f32 %v143, 1e-16
    %v168 = vmax.f32 %v150, 1e-16
    %v169 = vmax.f32 %v157, 1e-16
    %v170 = vrsqrt.pop %v166
    %v171 = vrsqrt.pop %v167
    %v172 = vrsqrt.pop %v168
    %v173 = vrsqrt.pop %v169
    %v174 = vmul.f32 %v162, %v170
    %v175 = vmul.f32 %v163, %v171
    %v176 = vmul.f32 %v164, %v172
    %v177 = vmul.f32 %v165, %v173
    %v178 = vmul.f32 %v64, %v174
    %v179 = vmul.f32 %v71, %v175
    %v180 = vmul.f32 %v78, %v176
    %v181 = vmul.f32 %v85, %v177
    %v182 = vsub.f32 1.0, %v178
    %v183 = vsub.f32 1.0, %v179
    %v184 = vsub.f32 1.0, %v180
    %v185 = vsub.f32 1.0, %v181
    %v186 = vld [vmem:[#allocation2] sm:$0xf]
    %v191 = vcombine.low %v182, %v183
    %v193 = vunpack.c.l.s4 1983009808
    %v194 = vunpack.c.0.s8 %v193
    %v195 = vlaneseq
    %v196 = vshrl.u32 %v195, 7
    %v197 = vsub.s32 %v194, %v196
    %v198 = vrot.slane %v191, %v197
    %v199 = vcombine.low %v184, %v185
    %v201 = vunpack.c.l.s4 1983009808
    %v202 = vunpack.c.0.s8 %v201
    %v203 = vlaneseq
    %v204 = vshrl.u32 %v203, 7
    %v205 = vsub.s32 %v202, %v204
    %v206 = vrot.slane %v199, %v205
    %vm207 = vcmask 1044484
    %v208 = vsel %vm207, %v198, %v198
    %vm209 = vcmask 1046534
    %v210 = vsel %vm209, %v198, %v208
    %v211 = vrot.slane %v206, 7
    %vm212 = vcmask 1041409
    %v213 = vsel %vm212, %v211, %v210
    %vm214 = vcmask 1043459
    %v215 = vsel %vm214, %v211, %v213
    %vm216 = vcmask 1045509
    %v217 = vsel %vm216, %v211, %v215
    %vm218 = vcmask 1047559
    %v219 = vsel %vm218, %v211, %v217
    %v221 = vadd.f32 %v186, %v219
    %222 = vst [vmem:[#allocation2] sm:$0xf] %v221
    // Predicated region
    $region22: #{tpu_custom_call.1} parent=1 // pred_check
      %p223 = pneg %p40
    $region23: #{tpu_custom_call.1} parent=1 // pred_check_branch
      %225 = sbr.rel (%p223) target = $region25
    $region24: #{tpu_custom_call.1} parent=1 // pred_region
      %v226 = vld [vmem:[#allocation2] sm:$0xf]
      %v229 = vunpack.c.l.s4 1983009808
      %v230 = vunpack.c.0.s8 %v229
      %v231 = vlaneseq
      %v232 = vshrl.u32 %v231, 7
      %v233 = vsub.s32 %v230, %v232
      %v234 = vrot.slane %v226, %v233
      %v235 = vcombine.high %v234, %v234
      %vm238 = vcmask 1041408
      %v239 = vsel %vm238, %v234, 0.0
      %v240 = vsel %vm238, %v235, 0.0
      %v241 = vadd.f32 %v239, %v240
      %242 = vadd.xlane.f32.xlu0 %v241
      %v243 = vpop.xlane.xlu0 %242
      %v244 = vrot.slane %v243, 4
      %v245 = vadd.f32 %v243, %v244
      %v246 = vrot.slane %v245, 2
      %v247 = vadd.f32 %v245, %v246
      %v248 = vrot.slane %v247, 1
      %v249 = vadd.f32 %v247, %v248
      %s250 = vtos %v249
      %v251 = vstv %s250
      %vm252 = vcmask 0
      %253 = vst.msk [vmem:[#allocation8] sm:$0x1] %vm252, %v251
    $region25: #{tpu_custom_call.1} parent=1 // pred_fallthru
      _
    // Predicated region
    $region26: #{tpu_custom_call.1} parent=1 // pred_check
      _
    $region27: #{tpu_custom_call.1} parent=1 // pred_check_branch
      %255 = sbr.rel (0) target = $region29
    $region28: #{tpu_custom_call.1} parent=1 // pred_region
      %s257 = ssub.s32 16, 16
      %258 = vsyncadd [#allocation5], %s257
      %s260 = sshll.u32 [#allocation8], 4
      %s261 = int_to_ptr.vmem [resolvable:$true] %s260
      %263 = dma.vmem_to_hbm [thread:$0]  %s261, 16, %s2, [#allocation5]
    $region29: #{tpu_custom_call.1} parent=1 // pred_fallthru
      _
    // Predicated region
    $region30: #{tpu_custom_call.1} parent=1 // pred_check
      _
    $region31: #{tpu_custom_call.1} parent=1 // pred_check_branch
      %265 = sbr.rel (0) target = $region33
    $region32: #{tpu_custom_call.1} parent=1 // pred_region
      %266 = dma.done [#allocation5], 16
    $region33: #{tpu_custom_call.1} parent=1 // pred_fallthru
      _
    %267 = vsyncpa [#allocation4], 1
    %268 = vsyncpa [#allocation7], 1
    %269 = vsyncpa [#allocation5], 1

</llo_original>
